<compile_context>
chip_gen: v5e
topology: v5e:2x2
jax: 0.10.0
libtpu: 0.0.40
codegen_flags: <defaults>
</compile_context>

<pallas_src>
import functools

import jax
import jax.numpy as jnp
from jax.experimental import pallas as pl
from jax.experimental.pallas import tpu as pltpu

MARGIN = 3.0
EPS = 1e-08


def _round_up(x, m):
    return ((x + m - 1) // m) * m


def _vmem_budget():
    """(per-feature-buffer byte cap, scoped vmem_limit_bytes) for this chip."""
    vmem_bytes = 128 * 1024 * 1024
    try:
        info = pltpu.get_tpu_info()
        vmem_bytes = int(getattr(info, "vmem_capacity_bytes", vmem_bytes))
    except Exception:
        pass
    if vmem_bytes <= 64 * 1024 * 1024:            # v7x-class: 64 MiB per TensorCore
        return 4 * 1024 * 1024, 48 * 1024 * 1024
    return 8 * 1024 * 1024, 96 * 1024 * 1024      # v5e / v6e: 128 MiB physical VMEM


def _contrastive_kernel(tgt_ref, f1_ref, f2_ref, out_ref, *,
                        tile_rows, d, nb, ragged, use_mxu):
    # tgt_ref : (tile_rows, 1) per-step target tile
    # f1_ref, f2_ref : (tile_rows, D) per-step feature tiles
    # out_ref : (1, 1, 1) per-tile partial sum (0.5/B applied by the caller)
    o1 = f1_ref[...].astype(jnp.float32)
    o2 = f2_ref[...].astype(jnp.float32)
    target = tgt_ref[...].astype(jnp.float32)                     # (tile_rows, 1)

    diff = o2 - o1
    sq = diff * diff                                              # (tile_rows, D)

    if use_mxu:
        # Reduce over D on the (otherwise idle) MXU so the XLU never becomes the
        # binding unit on v7x. One-hot column matrix => distances land in lane 0.
        # Exactness: split sq into bf16 hi/lo parts; both dots accumulate in f32.
        col = jax.lax.broadcasted_iota(jnp.int32, (d, 128), 1)
        ones_col = jnp.where(col == 0, 1.0, 0.0).astype(jnp.bfloat16)   # (D, 128)
        sq_hi = sq.astype(jnp.bfloat16)
        sq_lo = (sq - sq_hi.astype(jnp.float32)).astype(jnp.bfloat16)
        dist_full = (
            jnp.dot(sq_hi, ones_col, preferred_element_type=jnp.float32)
            + jnp.dot(sq_lo, ones_col, preferred_element_type=jnp.float32)
        )                                                         # (tile_rows, 128)
        distances = dist_full[:, :1]                              # (tile_rows, 1)
    else:
        distances = jnp.sum(sq, axis=1, keepdims=True)            # (tile_rows, 1)

    hinge = jnp.maximum(MARGIN - jnp.sqrt(distances + EPS), 0.0)
    losses = target * distances + (1.0 - target) * hinge * hinge  # 0.5 applied later

    if ragged:
        # Last tile extends past nb: Pallas leaves those rows unspecified, so mask.
        i = pl.program_id(0)
        row = i * tile_rows + jax.lax.broadcasted_iota(jnp.int32, (tile_rows, 1), 0)
        losses = jnp.where(row < nb, losses, 0.0)

    out_ref[...] = jnp.sum(losses).reshape(1, 1, 1)


def contrastive_loss(features, features_, status, *, tile_rows=None):
    """features, features_: (n, B, D); status: (B, n) with 0/1 labels."""
    n, B, D = features.shape
    nb = n * B

    f1 = features.reshape(nb, D)                                  # free (contiguous)
    f2 = features_.reshape(nb, D)
    # Flattened row r = i*B + b  ->  target = status[b, i]
    tgt = jnp.transpose(status, (1, 0)).reshape(nb, 1).astype(jnp.float32)

    itemsize = jnp.dtype(features.dtype).itemsize
    feat_buf_cap, vmem_limit = _vmem_budget()
    use_mxu = (D % 128 == 0)
    row_align = 16 if use_mxu else 8      # bf16 MXU operands pack 16 rows/sublane grp

    if tile_rows is None:
        cap_rows = max(row_align, feat_buf_cap // max(1, D * itemsize))
        num_tiles = pl.cdiv(nb, cap_rows)
        if nb > 8:
            num_tiles = max(num_tiles, 2)  # keep both v7x TensorCores busy
        tile_rows = _round_up(pl.cdiv(nb, max(num_tiles, 1)), row_align)
    else:
        tile_rows = _round_up(max(int(tile_rows), row_align), row_align)
    num_tiles = pl.cdiv(nb, tile_rows)
    ragged = (nb % tile_rows) != 0

    mxu_flops = (4 * nb * D * 128) if use_mxu else (2 * nb * D)
    cost = pl.CostEstimate(
        flops=int(mxu_flops + 4 * nb * D + 12 * nb),
        transcendentals=int(nb),
        bytes_accessed=int(2 * nb * D * itemsize + nb * 4 + num_tiles * 4),
    )

    kernel = functools.partial(
        _contrastive_kernel,
        tile_rows=tile_rows, d=D, nb=nb, ragged=ragged, use_mxu=use_mxu,
    )

    partials = pl.pallas_call(
        kernel,
        out_shape=jax.ShapeDtypeStruct((num_tiles, 1, 1), jnp.float32),
        grid_spec=pltpu.PrefetchScalarGridSpec(
            num_scalar_prefetch=0,
            grid=(num_tiles,),
            in_specs=[
                pl.BlockSpec((tile_rows, 1), lambda i: (i, 0)),    # target row tile
                pl.BlockSpec((tile_rows, D), lambda i: (i, 0)),    # features row tile
                pl.BlockSpec((tile_rows, D), lambda i: (i, 0)),    # features_ row tile
            ],
            out_specs=pl.BlockSpec((1, 1, 1), lambda i: (i, 0, 0)),
        ),
        compiler_params=pltpu.CompilerParams(
            dimension_semantics=("parallel",),
            vmem_limit_bytes=vmem_limit,
        ),
        cost_estimate=cost,
    )(tgt, f1, f2)

    # Each view is averaged over the same B, so total = 0.5 * (sum of rows) / B.
    return 0.5 * jnp.sum(partials) / jnp.float32(B)


def _reference_loss(features, features_, status):
    """Pure-JAX reference mirroring the PyTorch module."""
    total = 0.0
    n = status.shape[1]
    for i in range(n):
        target = status[:, i].astype(jnp.float32)
        d = jnp.sum((features_[i] - features[i]) ** 2, axis=1)
        hinge = jnp.maximum(MARGIN - jnp.sqrt(d + EPS), 0.0)
        losses = 0.5 * (target * d + (1.0 - target) * hinge**2)
        total = total + jnp.mean(losses)
    return total


def _check(features, features_, status, **kw):
    loss = jax.block_until_ready(contrastive_loss(features, features_, status, **kw))
    ref = _reference_loss(features, features_, status)
    assert jnp.allclose(loss, ref, rtol=1e-4, atol=1e-4), (loss, ref)


if __name__ == "__main__":
    key = jax.random.PRNGKey(0)

    # Case 1: D multiple of 128 -> MXU-reduce path, auto tiling (2 parallel tiles).
    n, B, D = 4, 8, 128
    k1, k2, k3, k4 = jax.random.split(key, 4)
    features = jax.random.normal(k1, (n, B, D), dtype=jnp.float32)
    features_ = jax.random.normal(k2, (n, B, D), dtype=jnp.float32)
    status = (jax.random.uniform(k3, (B, n)) > 0.5).astype(jnp.float32)
    _check(features, features_, status)

    # Case 2: larger D, auto tiling (2 tiles) and an explicit override (4 tiles).
    n2, B2, D2 = 2, 64, 256
    k5, k6, k7, k8 = jax.random.split(k4, 4)
    fa = jax.random.normal(k5, (n2, B2, D2), dtype=jnp.float32)
    fb = jax.random.normal(k6, (n2, B2, D2), dtype=jnp.float32)
    st = (jax.random.uniform(k7, (B2, n2)) > 0.5).astype(jnp.float32)
    _check(fa, fb, st)
    _check(fa, fb, st, tile_rows=32)

    # Case 3: nb = 15 (ragged last tile) with D = 64 -> row mask + jnp.sum fallback.
    n3, B3, D3 = 3, 5, 64
    k9, k10, k11 = jax.random.split(k8, 3)
    fc = jax.random.normal(k9, (n3, B3, D3), dtype=jnp.float32)
    fd = jax.random.normal(k10, (n3, B3, D3), dtype=jnp.float32)
    sc = (jax.random.uniform(k11, (B3, n3)) > 0.5).astype(jnp.float32)
    _check(fc, fd, sc)

    print("KERNEL_OK")
</pallas_src>

<mosaic_0001>
module attributes {stable_mosaic.version = 11 : i64} {
  func.func @_contrastive_kernel(%arg0: i32, %arg1: memref<16x1xf32, #tpu.memory_space<vmem>>, %arg2: memref<16x128xf32, #tpu.memory_space<vmem>>, %arg3: memref<16x128xf32, #tpu.memory_space<vmem>>, %arg4: memref<1x1x1xf32, #tpu.memory_space<vmem>>) attributes {dimension_semantics = [#tpu.dimension_semantics<parallel>], iteration_bounds = array<i64: 2>, scalar_prefetch = 0 : i64, scratch_operands = 0 : i64, tpu.core_type = #tpu.core_type<tc>, window_params = [{transform_indices = @transform_0, window_bounds = array<i64: 16, 1>}, {transform_indices = @transform_1, window_bounds = array<i64: 16, 128>}, {transform_indices = @transform_2, window_bounds = array<i64: 16, 128>}, {transform_indices = @transform_3, window_bounds = array<i64: 1, 1, 1>}]} {
    %c0 = arith.constant 0 : index
    %c0_0 = arith.constant 0 : index
    %0 = vector.load %arg2[%c0, %c0_0] : memref<16x128xf32, #tpu.memory_space<vmem>>, vector<16x128xf32>
    %c0_1 = arith.constant 0 : index
    %c0_2 = arith.constant 0 : index
    %1 = vector.load %arg3[%c0_1, %c0_2] : memref<16x128xf32, #tpu.memory_space<vmem>>, vector<16x128xf32>
    %c0_3 = arith.constant 0 : index
    %c0_4 = arith.constant 0 : index
    %2 = vector.load %arg1[%c0_3, %c0_4] : memref<16x1xf32, #tpu.memory_space<vmem>>, vector<16x1xf32>
    %3 = arith.subf %1, %0 : vector<16x128xf32>
    %4 = arith.mulf %3, %3 : vector<16x128xf32>
    %5 = tpu.iota {dimensions = array<i32: 1>} : vector<128x128xi32>
    %c0_i32 = arith.constant 0 : i32
    %6 = vector.broadcast %c0_i32 : i32 to vector<128x128xi32>
    %7 = arith.cmpi eq, %5, %6 : vector<128x128xi32>
    %cst = arith.constant 1.000000e+00 : f32
    %cst_5 = arith.constant 0.000000e+00 : f32
    %8 = vector.broadcast %cst : f32 to vector<128x128xf32>
    %9 = vector.broadcast %cst_5 : f32 to vector<128x128xf32>
    %10 = arith.select %7, %8, %9 : vector<128x128xi1>, vector<128x128xf32>
    %11 = arith.truncf %10 : vector<128x128xf32> to vector<128x128xbf16>
    %12 = arith.truncf %4 : vector<16x128xf32> to vector<16x128xbf16>
    %13 = arith.extf %12 : vector<16x128xbf16> to vector<16x128xf32>
    %14 = arith.subf %4, %13 : vector<16x128xf32>
    %15 = arith.truncf %14 : vector<16x128xf32> to vector<16x128xbf16>
    %cst_6 = arith.constant dense<0.000000e+00> : vector<16x128xf32>
    %16 = tpu.matmul %12, %11, %cst_6 {dimension_numbers = #tpu.dot_dimension_numbers<[1], [0], [0], [1], [0, 0, 1, 1], [], []>} : vector<16x128xbf16>, vector<128x128xbf16>, vector<16x128xf32> -> vector<16x128xf32>
    %cst_7 = arith.constant dense<0.000000e+00> : vector<16x128xf32>
    %17 = tpu.matmul %15, %11, %cst_7 {dimension_numbers = #tpu.dot_dimension_numbers<[1], [0], [0], [1], [0, 0, 1, 1], [], []>} : vector<16x128xbf16>, vector<128x128xbf16>, vector<16x128xf32> -> vector<16x128xf32>
    %18 = arith.addf %16, %17 : vector<16x128xf32>
    %19 = vector.extract_strided_slice %18 {offsets = [0, 0], sizes = [16, 1], strides = [1, 1]} : vector<16x128xf32> to vector<16x1xf32>
    %cst_8 = arith.constant 9.99999993E-9 : f32
    %20 = vector.broadcast %cst_8 : f32 to vector<16x1xf32>
    %21 = arith.addf %19, %20 : vector<16x1xf32>
    %22 = math.sqrt %21 : vector<16x1xf32>
    %cst_9 = arith.constant 3.000000e+00 : f32
    %23 = vector.broadcast %cst_9 : f32 to vector<16x1xf32>
    %24 = arith.subf %23, %22 : vector<16x1xf32>
    %cst_10 = arith.constant 0.000000e+00 : f32
    %25 = vector.broadcast %cst_10 : f32 to vector<16x1xf32>
    %26 = arith.maximumf %24, %25 : vector<16x1xf32>
    %27 = arith.mulf %2, %19 : vector<16x1xf32>
    %cst_11 = arith.constant 1.000000e+00 : f32
    %28 = vector.broadcast %cst_11 : f32 to vector<16x1xf32>
    %29 = arith.subf %28, %2 : vector<16x1xf32>
    %30 = arith.mulf %29, %26 : vector<16x1xf32>
    %31 = arith.mulf %30, %26 : vector<16x1xf32>
    %32 = arith.addf %27, %31 : vector<16x1xf32>
    %33 = vector.shape_cast %32 : vector<16x1xf32> to vector<1x16x1xf32>
    %cst_12 = arith.constant dense<0.000000e+00> : vector<1xf32>
    %34 = vector.multi_reduction <add>, %33, %cst_12 [1, 2] : vector<1x16x1xf32> to vector<1xf32>
    %35 = vector.shape_cast %34 : vector<1xf32> to vector<1x1x1xf32>
    %36 = vector.extract %35[0, 0, 0] : f32 from vector<1x1x1xf32>
    %37 = vector.broadcast %36 : f32 to vector<1x1x1xf32>
    %c0_13 = arith.constant 0 : index
    %c0_14 = arith.constant 0 : index
    %c0_15 = arith.constant 0 : index
    %38 = vector.load %arg4[%c0_13, %c0_14, %c0_15] : memref<1x1x1xf32, #tpu.memory_space<vmem>>, vector<1x1x1xf32>
    tpu.vector_store %arg4[%c0_13, %c0_14, %c0_15], %37 {strides = array<i32>} : memref<1x1x1xf32, #tpu.memory_space<vmem>>, vector<1x1x1xf32>,
    return
  }
  func.func @transform_0(%arg0: i32) -> (i32, i32) {
    %c0_i32 = arith.constant 0 : i32
    %c0_i32_0 = arith.constant 0 : i32
    return %arg0, %c0_i32 : i32, i32
  }
  func.func @transform_1(%arg0: i32) -> (i32, i32) {
    %c0_i32 = arith.constant 0 : i32
    %c0_i32_0 = arith.constant 0 : i32
    return %arg0, %c0_i32 : i32, i32
  }
  func.func @transform_2(%arg0: i32) -> (i32, i32) {
    %c0_i32 = arith.constant 0 : i32
    %c0_i32_0 = arith.constant 0 : i32
    return %arg0, %c0_i32 : i32, i32
  }
  func.func @transform_3(%arg0: i32) -> (i32, i32, i32) {
    %c0_i32 = arith.constant 0 : i32
    %c0_i32_0 = arith.constant 0 : i32
    %c0_i32_1 = arith.constant 0 : i32
    return %arg0, %c0_i32, %c0_i32_0 : i32, i32, i32
  }
}

</mosaic_0001>

<llo_original>
// kernel: tpu_custom_call.1
$region0: #{tpu_custom_call.1}
  #allocation0 [shape = 'u32[]', space=smem, size = 0x4, offset = 0x4, fixed_abs, tag = 'smem constant byte address 0x4 - core index']
  #allocation1 [shape = 'u32[72,128]{1,0:T(1,128)}', space=vmem, size = 0x9000, scoped, tag = 'internal scratch']
  %s0 = inlined_call_operand.vmem [shape: f32[32,1], index: 0, kind: input, shape index: {}]
  %s1 = inlined_call_operand.vmem [shape: f32[32,128], index: 1, kind: input, shape index: {}]
  %s2 = inlined_call_operand.hbm [shape: f32[32,128], index: 2, kind: input, shape index: {}]
  %s3 = inlined_call_operand.vmem [shape: f32[2,1,1], index: 3, kind: output, shape index: {}]
  %s4 = sld [smem:[#allocation0]]
  $region49: #{tpu_custom_call.1} parent=0
    _
  %s6 = ssub.s32 1, %s4
  %s7 = scalar_select 0, %s6, %s4
  $region1: #{tpu_custom_call.1} parent=0
    #allocation2 [shape = 'u8[16384]{0}', space=vmem, size = 0x4000, scoped, tag = 'input window, operand 2']
    #allocation3 [shape = 's32[2]{0}', space=sflag, size = 0x8, scoped, tag = 'scoped memory for tpu_custom_call.1']
    %8 = vsyncpa [#allocation3], 0
    %s9 = scalar_lea.sflag [#allocation3], 1
    %10 = vsyncpa %s9, 0
    loop: start=0, step=1, limit=4
    $region2: #{tpu_custom_call.1} parent=1 // loop_pre_header
      _
    $region3: #{tpu_custom_call.1} parent=1 // loop_header
      %s12 = sphi 0, %s16
      %p13 = scmp.ge.s32.totalorder %s12, 4
      %s22 = sphi 0, %s24
      %s25 = sphi 0, %s22
      %s26 = sphi 0, %s25
      %s42 = sphi 0, %s26
      %s48 = sphi 0, %s50
      %s51 = sphi 0, %s48
      %s52 = sphi 0, %s51
      %s68 = sphi 0, %s52
      %s74 = sphi 0, %s76
      %s77 = sphi 0, %s74
      %s78 = sphi 0, %s77
      %s94 = sphi 0, %s78
      %s100 = sphi 0, %s102
      %s103 = sphi 0, %s100
      %s104 = sphi 0, %s103
      %s120 = sphi 0, %s104
    $region4: #{tpu_custom_call.1} parent=1 // loop_header_branch
      %15 = sbr.rel (%p13) target = $region8
    $region5: #{tpu_custom_call.1} parent=1 // loop_body
      %s17 = ssub.s32 %s12, 1
      %s18 = ssub.s32 %s12, 2
      %s19 = sadd.s32 %s12, 1
      %s20 = ssub.s32 %s12, %s19
      %p21 = scmp.eq.s32.totalorder %s20, 0
      %s23 = sadd.s32 %s22, 1
      %s24 = scalar_select %p21, %s22, %s23
      %p27 = pneg %p21
      %p28 = scmp.eq.s32.totalorder %s12, 1
      %p29 = por %p27, %p28
      %p30 = scmp.ne.s32.totalorder %s22, %s25
      %p31 = scmp.eq.s32.totalorder %s12, 0
      %p32 = por %p30, %p31
      %p33 = scmp.ne.s32.totalorder %s22, %s25
      %p34 = scmp.eq.s32.totalorder %s17, 1
      %p35 = por %p33, %p34
      %p36 = scmp.ne.s32.totalorder %s25, %s26
      %p37 = scmp.eq.s32.totalorder %s17, 0
      %p38 = por %p36, %p37
      %p39 = scmp.ne.s32.totalorder %s25, %s26
      %p40 = scmp.eq.s32.totalorder %s18, 1
      %p41 = por %p39, %p40
      %p43 = scmp.ne.s32.totalorder %s26, %s42
      %p44 = scmp.eq.s32.totalorder %s18, 0
      %p45 = por %p43, %p44
      %s46 = ssub.s32 %s12, %s19
      %p47 = scmp.eq.s32.totalorder %s46, 0
      %s49 = sadd.s32 %s48, 1
      %s50 = scalar_select %p47, %s48, %s49
      %p53 = pneg %p47
      %p54 = scmp.eq.s32.totalorder %s12, 1
      %p55 = por %p53, %p54
      %p56 = scmp.ne.s32.totalorder %s48, %s51
      %p57 = scmp.eq.s32.totalorder %s12, 0
      %p58 = por %p56, %p57
      %p59 = scmp.ne.s32.totalorder %s48, %s51
      %p60 = scmp.eq.s32.totalorder %s17, 1
      %p61 = por %p59, %p60
      %p62 = scmp.ne.s32.totalorder %s51, %s52
      %p63 = scmp.eq.s32.totalorder %s17, 0
      %p64 = por %p62, %p63
      %p65 = scmp.ne.s32.totalorder %s51, %s52
      %p66 = scmp.eq.s32.totalorder %s18, 1
      %p67 = por %p65, %p66
      %p69 = scmp.ne.s32.totalorder %s52, %s68
      %p70 = scmp.eq.s32.totalorder %s18, 0
      %p71 = por %p69, %p70
      %s72 = ssub.s32 %s12, %s19
      %p73 = scmp.eq.s32.totalorder %s72, 0
      %s75 = sadd.s32 %s74, 1
      %s76 = scalar_select %p73, %s74, %s75
      %p79 = pneg %p73
      %p80 = scmp.eq.s32.totalorder %s12, 1
      %p81 = por %p79, %p80
      %p82 = scmp.ne.s32.totalorder %s74, %s77
      %p83 = scmp.eq.s32.totalorder %s12, 0
      %p84 = por %p82, %p83
      %p85 = scmp.ne.s32.totalorder %s74, %s77
      %p86 = scmp.eq.s32.totalorder %s17, 1
      %p87 = por %p85, %p86
      %p88 = scmp.ne.s32.totalorder %s77, %s78
      %p89 = scmp.eq.s32.totalorder %s17, 0
      %p90 = por %p88, %p89
      %p91 = scmp.ne.s32.totalorder %s77, %s78
      %p92 = scmp.eq.s32.totalorder %s18, 1
      %p93 = por %p91, %p92
      %p95 = scmp.ne.s32.totalorder %s78, %s94
      %p96 = scmp.eq.s32.totalorder %s18, 0
      %p97 = por %p95, %p96
      %s98 = ssub.s32 %s12, %s19
      %p99 = scmp.eq.s32.totalorder %s98, 0
      %s101 = sadd.s32 %s100, 1
      %s102 = scalar_select %p99, %s100, %s101
      %p105 = pneg %p99
      %p106 = scmp.eq.s32.totalorder %s12, 1
      %p107 = por %p105, %p106
      %p108 = scmp.ne.s32.totalorder %s100, %s103
      %p109 = scmp.eq.s32.totalorder %s12, 0
      %p110 = por %p108, %p109
      %p111 = scmp.ne.s32.totalorder %s100, %s103
      %p112 = scmp.eq.s32.totalorder %s17, 1
      %p113 = por %p111, %p112
      %p114 = scmp.ne.s32.totalorder %s103, %s104
      %p115 = scmp.eq.s32.totalorder %s17, 0
      %p116 = por %p114, %p115
      %p117 = scmp.ne.s32.totalorder %s103, %s104
      %p118 = scmp.eq.s32.totalorder %s18, 1
      %p119 = por %p117, %p118
      %p121 = scmp.ne.s32.totalorder %s104, %s120
      %p122 = scmp.eq.s32.totalorder %s18, 0
      %p123 = por %p121, %p122
      %p124 = scmp.le.s32.totalorder 1, %s12
      %p125 = scmp.lt.s32.totalorder %s12, 3
      %p126 = pnand %p124, %p125
      %p127 = pneg %p126
      // Predicated region
      $region9: #{tpu_custom_call.1} parent=5 // pred_check
        _
      $region10: #{tpu_custom_call.1} parent=5 // pred_check_branch
        %129 = sbr.rel (%p126) target = $region12
      $region11: #{tpu_custom_call.1} parent=5 // pred_region
        %s130 = ssub.s32 %s12, 1
      $region12: #{tpu_custom_call.1} parent=5 // pred_fallthru
        _
      %p131 = scmp.lt.s32.totalorder %s12, 2
      // Predicated region
      $region13: #{tpu_custom_call.1} parent=5 // pred_check
        %p132 = pneg %p131
      $region14: #{tpu_custom_call.1} parent=5 // pred_check_branch
        %134 = sbr.rel (%p132) target = $region16
      $region15: #{tpu_custom_call.1} parent=5 // pred_region
        // Predicated region
        $region17: #{tpu_custom_call.1} parent=15 // pred_check
          %p135 = pneg %p32
        $region18: #{tpu_custom_call.1} parent=15 // pred_check_branch
          %137 = sbr.rel (%p135) target = $region20
        $region19: #{tpu_custom_call.1} parent=15 // pred_region
          %s138 = smul.u32 2, %s12
          %p139 = scmp.lt.s32.totalorder %s138, 3
          %s140 = scalar_select %p139, %s138, 3
          %s141 = smul.addr %s140, 8
          %s142 = scalar_lea.vmem %s0, %s141
          %s143 = smul.u32 2, %s12
        $region20: #{tpu_custom_call.1} parent=15 // pred_fallthru
          _
        // Predicated region
        $region21: #{tpu_custom_call.1} parent=15 // pred_check
          %p144 = pneg %p58
        $region22: #{tpu_custom_call.1} parent=15 // pred_check_branch
          %146 = sbr.rel (%p144) target = $region24
        $region23: #{tpu_custom_call.1} parent=15 // pred_region
          %s147 = smul.u32 2, %s12
          %p148 = scmp.lt.s32.totalorder %s147, 3
          %s149 = scalar_select %p148, %s147, 3
          %s150 = smul.addr %s149, 8
          %s151 = scalar_lea.vmem %s1, %s150
          %s152 = smul.u32 2, %s12
        $region24: #{tpu_custom_call.1} parent=15 // pred_fallthru
          _
        // Predicated region
        $region25: #{tpu_custom_call.1} parent=15 // pred_check
          %p153 = pneg %p84
        $region26: #{tpu_custom_call.1} parent=15 // pred_check_branch
          %155 = sbr.rel (%p153) target = $region28
        $region27: #{tpu_custom_call.1} parent=15 // pred_region
          %s156 = sand.u32 %s74, 1
          %s157 = scalar_lea.sflag [#allocation3], %s156
          %s158 = sand.u32 %s74, 1
          %s159 = smul.addr %s158, 16
          %s160 = scalar_lea.vmem [#allocation2], %s159
          %s161 = smul.u32 2, %s12
          %163 = vsyncadd %s157, 0
          %s164 = smul.addr %s161, 8
          %s165 = scalar_lea.hbm %s2, %s164
          %s166 = sshll.u32 %s165, 4
          %s167 = int_to_ptr.hbm [resolvable:$true] %s166
          %s168 = sshll.u32 %s160, 4
          %s169 = int_to_ptr.vmem [resolvable:$true] %s168
          %174 = dma.hbm_to_vmem [thread:$0]  %s167, 256, %s169, %s157, 128, 128, 8
        $region28: #{tpu_custom_call.1} parent=15 // pred_fallthru
          _
      $region16: #{tpu_custom_call.1} parent=5 // pred_fallthru
        _
      %p175 = scmp.le.s32.totalorder 1, %s12
      %p176 = scmp.lt.s32.totalorder %s12, 3
      %p177 = pnand %p175, %p176
      %p178 = pneg %p177
      // Predicated region
      $region29: #{tpu_custom_call.1} parent=5 // pred_check
        _
      $region30: #{tpu_custom_call.1} parent=5 // pred_check_branch
        %180 = sbr.rel (%p177) target = $region32
      $region31: #{tpu_custom_call.1} parent=5 // pred_region
        %s181 = ssub.s32 %s12, 1
        %s182 = sand.u32 %s77, 1
        %s183 = scalar_lea.sflag [#allocation3], %s182
        %s184 = sand.u32 %s77, 1
        %s185 = smul.addr %s184, 16
        %s186 = scalar_lea.vmem [#allocation2], %s185
        // Predicated region
        $region33: #{tpu_custom_call.1} parent=31 // pred_check
          %p187 = pneg %p90
        $region34: #{tpu_custom_call.1} parent=31 // pred_check_branch
          %189 = sbr.rel (%p187) target = $region36
        $region35: #{tpu_custom_call.1} parent=31 // pred_region
          %191 = dma.done %s183, 256
        $region36: #{tpu_custom_call.1} parent=31 // pred_fallthru
          _
        %s192 = smul.u32 2, %s17
        %p193 = scmp.lt.s32.totalorder %s192, 3
        %s194 = scalar_select %p193, %s192, 3
        %s195 = smul.addr %s194, 8
        %s196 = scalar_lea.vmem %s0, %s195
        %p197 = pneg %p38
        %p198 = pneg %p35
        %s199 = smul.u32 2, %s17
        %p200 = scmp.lt.s32.totalorder %s199, 3
        %s201 = scalar_select %p200, %s199, 3
        %s202 = smul.addr %s201, 8
        %s203 = scalar_lea.vmem %s1, %s202
        %p204 = pneg %p64
        %p205 = pneg %p61
        %s206 = sand.u32 %s77, 1
        %s207 = scalar_lea.sflag [#allocation3], %s206
        %s208 = sand.u32 %s77, 1
        %s209 = smul.addr %s208, 16
        %s210 = scalar_lea.vmem [#allocation2], %s209
        %p211 = pneg %p90
        %p212 = pneg %p87
        %p213 = pneg %p116
        %p214 = pneg %p113
        %p215 = scmp.lt.s32.totalorder %s17, 1
        %s216 = scalar_select %p215, %s17, 1
        %s217 = scalar_lea.vmem %s3, %s216
        %s218 = smul.u32 2, %s17
        %p219 = scmp.lt.s32.totalorder %s218, 3
        %s220 = scalar_select %p219, %s218, 3
        %s221 = smul.addr %s220, 8
        %s222 = scalar_lea.vmem %s0, %s221
        %s223 = smul.u32 2, %s17
        %s224 = smul.u32 2, %s17
        %p225 = scmp.lt.s32.totalorder %s224, 3
        %s226 = scalar_select %p225, %s224, 3
        %s227 = smul.addr %s226, 8
        %s228 = scalar_lea.vmem %s1, %s227
        %s229 = smul.u32 2, %s17
        %s230 = smul.u32 2, %s17
        %p231 = scmp.lt.s32.totalorder %s17, 1
        %s232 = scalar_select %p231, %s17, 1
        %s233 = scalar_lea.vmem %s3, %s232
        %v234 = vld [vmem:[%s228] sm:$0xff]
        %v235 = vld [vmem:[%s228 + $0x8] sm:$0xff]
        %v236 = vld [vmem:[%s186] sm:$0xff]
        %v237 = vld [vmem:[%s186 + $0x8] sm:$0xff]
        %v238 = vld [vmem:[%s222] sm:$0xff]
        %v239 = vld [vmem:[%s222 + $0x8] sm:$0xff]
        %v240 = vsub.f32 %v236, %v234
        %v241 = vsub.f32 %v237, %v235
        %v242 = vmul.f32 %v240, %v240
        %v243 = vmul.f32 %v241, %v241
        %v244 = vlaneseq
        %v245 = vand.u32 %v244, 127
        %vm246 = vcmp.eq.s32.totalorder %v245, 0
        %v247 = vsel %vm246, 1.0, 0.0
        %v248 = vpack.c.bf16 %v247, %v247
        %v249 = vpack.c.bf16 %v242, %v242
        %v250 = vpack.c.bf16 %v243, %v243
        %v251 = vunpack.c.l.bf16 %v249
        %v252 = vunpack.c.l.bf16 %v250
        %v253 = vsub.f32 %v242, %v251
        %v254 = vsub.f32 %v243, %v252
        %v255 = vpack.c.bf16 %v254, %v253
        %256 = vmatpush.bf16.msra.mxu0 %v248
        %257 = vmatpush.bf16.msra.mxu0 %v248
        %258 = vmatpush.bf16.msra.mxu0 %v248
        %259 = vmatpush.bf16.msra.mxu0 %v248
        %260 = vmatpush.bf16.msra.mxu0 %v248
        %261 = vmatpush.bf16.msra.mxu0 %v248
        %262 = vmatpush.bf16.msra.mxu0 %v248
        %263 = vmatpush.bf16.msra.mxu0 %v248
        %264 = vmatmul.bf16.gmra.mxu0 %v255
        %v265 = vpop.f32.mrf.mxu0
        %v266 = vadd.f32 0.0, %v265
        %v267 = vpop.f32.mrf.mxu0
        %v268 = vadd.f32 0.0, %v267
        %269 = vdwg.mxu0
        %v272 = vunpack.c.l.b16 %v249
        %v273 = vunpack.c.l.b16 %v250
        %v274 = vpack.c.b16 %v273, %v272
        %276 = vmatpush.bf16.msra.mxu0 %v248
        %277 = vmatpush.bf16.msra.mxu0 %v248
        %278 = vmatpush.bf16.msra.mxu0 %v248
        %279 = vmatpush.bf16.msra.mxu0 %v248
        %280 = vmatpush.bf16.msra.mxu0 %v248
        %281 = vmatpush.bf16.msra.mxu0 %v248
        %282 = vmatpush.bf16.msra.mxu0 %v248
        %283 = vmatpush.bf16.msra.mxu0 %v248
        %284 = vmatmul.bf16.gmra.mxu0 %v274
        %v285 = vpop.f32.mrf.mxu0
        %v286 = vadd.f32 %v266, %v285
        %v287 = vpop.f32.mrf.mxu0
        %v288 = vadd.f32 %v268, %v287
        %289 = vdwg.mxu0
        %v290 = vadd.f32 %v286, 1e-08
        %v291 = vadd.f32 %v288, 1e-08
        %v292 = vrsqrt.pop %v290
        %v293 = vmul.f32 %v292, %v290
        %v294 = vmul.f32 %v293, %v292
        %v295 = vmul.f32 0.5, %v294
        %v296 = vsub.f32 1.5, %v295
        %v297 = vmul.f32 %v292, %v296
        %v298 = vmul.f32 %v290, %v297
        %vm299 = vcmp.eq.f32.partialorder %v290, inf
        %v300 = vsel %vm299, %v290, %v298
        %vm301 = vcmp.eq.f32.partialorder %v290, 0.0
        %v302 = vand.u32 %v290, 2147483648
        %v303 = vsel %vm301, %v302, %v300
        %v304 = vrsqrt.pop %v291
        %v305 = vmul.f32 %v304, %v291
        %v306 = vmul.f32 %v305, %v304
        %v307 = vmul.f32 0.5, %v306
        %v308 = vsub.f32 1.5, %v307
        %v309 = vmul.f32 %v304, %v308
        %v310 = vmul.f32 %v291, %v309
        %vm311 = vcmp.eq.f32.partialorder %v291, inf
        %v312 = vsel %vm311, %v291, %v310
        %vm313 = vcmp.eq.f32.partialorder %v291, 0.0
        %v314 = vand.u32 %v291, 2147483648
        %v315 = vsel %vm313, %v314, %v312
        %v316 = vsub.f32 3.0, %v303
        %v317 = vsub.f32 3.0, %v315
        %v318 = vmax.f32 %v316, 0.0
        %v319 = vmax.f32 %v317, 0.0
        %v320 = vmul.f32 %v238, %v286
        %v321 = vmul.f32 %v239, %v288
        %v322 = vsub.f32 1.0, %v238
        %v323 = vsub.f32 1.0, %v239
        %v324 = vmul.f32 %v322, %v318
        %v325 = vmul.f32 %v323, %v319
        %v326 = vmul.f32 %v324, %v318
        %v327 = vmul.f32 %v325, %v319
        %v328 = vadd.f32 %v320, %v326
        %v329 = vadd.f32 %v321, %v327
        %vm330 = vcmask 7168
        %v331 = vsel %vm330, %v328, 0.0
        %v332 = vsel %vm330, %v329, 0.0
        %v333 = vadd.f32 %v331, %v332
        %334 = vadd.xlane.f32.xlu0 %v333
        %v335 = vpop.xlane.xlu0 %334
        %v336 = vrot.slane %v335, 4
        %v337 = vadd.f32 %v335, %v336
        %v338 = vrot.slane %v337, 2
        %v339 = vadd.f32 %v337, %v338
        %v340 = vrot.slane %v339, 1
        %v341 = vadd.f32 %v339, %v340
        %s342 = vtos %v341
        %v343 = vstv %s342
        %vm344 = vcmask 0
        %345 = vst.msk [vmem:[%s233] sm:$0x1] %vm344, %v343
        %p346 = scmp.lt.s32.totalorder %s17, 1
        %s347 = scalar_select %p346, %s17, 1
        %s348 = scalar_lea.vmem %s3, %s347
        // Predicated region
        $region37: #{tpu_custom_call.1} parent=31 // pred_check
          %p349 = pneg %p113
        $region38: #{tpu_custom_call.1} parent=31 // pred_check_branch
          %351 = sbr.rel (%p349) target = $region40
        $region39: #{tpu_custom_call.1} parent=31 // pred_region
          _
        $region40: #{tpu_custom_call.1} parent=31 // pred_fallthru
          _
      $region32: #{tpu_custom_call.1} parent=5 // pred_fallthru
        _
      %p352 = scmp.le.s32.totalorder 2, %s12
      // Predicated region
      $region41: #{tpu_custom_call.1} parent=5 // pred_check
        %p353 = pneg %p352
      $region42: #{tpu_custom_call.1} parent=5 // pred_check_branch
        %355 = sbr.rel (%p353) target = $region44
      $region43: #{tpu_custom_call.1} parent=5 // pred_region
        %s356 = ssub.s32 %s12, 2
        // Predicated region
        $region45: #{tpu_custom_call.1} parent=43 // pred_check
          %p357 = pneg %p119
        $region46: #{tpu_custom_call.1} parent=43 // pred_check_branch
          %359 = sbr.rel (%p357) target = $region48
        $region47: #{tpu_custom_call.1} parent=43 // pred_region
          %p360 = scmp.lt.s32.totalorder %s18, 1
          %s361 = scalar_select %p360, %s18, 1
          %s362 = scalar_lea.vmem %s3, %s361
        $region48: #{tpu_custom_call.1} parent=43 // pred_fallthru
          _
      $region44: #{tpu_custom_call.1} parent=5 // pred_fallthru
        _
    $region6: #{tpu_custom_call.1} parent=1 // loop_footer
      %s16 = sadd.s32 1, %s12
    $region7: #{tpu_custom_call.1} parent=1 // loop_footer_branch
      %11 = sbr.rel target = $region3
    $region8: #{tpu_custom_call.1} parent=1 // loop_exit
      _
    %363 = vsyncpa [#allocation3], 1
    %s364 = scalar_lea.sflag [#allocation3], 1
    %365 = vsyncpa %s364, 1

</llo_original>
